<compile_context>
chip_gen: v7x
topology: tpu7x:2x2x1
jax: 0.10.0
libtpu: 0.0.40
codegen_flags: <defaults>
</compile_context>

<pallas_src>
import functools

import jax
import jax.numpy as jnp
from jax.experimental import pallas as pl
from jax.experimental.pallas import tpu as pltpu

_LANES = 128


def _qda_kernel(x_ref, r_ref, phi_ref, w_ref, bias_ref, out_ref, *, n_heads, head_dim):
    # x_ref   : (n_qubits, TBR, 128)          sample angles, batch on sublanes x lanes
    # r_ref   : (n_qubits, 1, 1)              R_q   = sqrt(A_q^2 + B_q^2)
    # phi_ref : (n_qubits, 1, 1)              phi_q = atan2(B_q, A_q)
    # w_ref   : (n_heads, num_classes, 1, 1)  fc weight, head-major columns
    # bias_ref: (num_classes, 1, 1)           fc bias
    # out_ref : (num_classes, TBR, 128)       logits, batch on sublanes x lanes
    x = x_ref[...]

    # Per-qubit <Z> before the CX ladder: one transcendental per element
    # (theta-only trig was folded into R/phi in the wrapper).
    z = r_ref[...] * jnp.cos(x - phi_ref[...])            # (n_qubits, TBR, 128)

    # Logits accumulator starts directly from the bias broadcast.
    logits = jnp.broadcast_to(bias_ref[...], out_ref.shape)

    # CX ladder -> measuring qubit j gives prod_{k<=j} z_k.  Head h measures qubit
    # h*head_dim.  Fused with the fc layer as broadcast MACs on the VPU.
    running = z[0]                                         # head 0 target is qubit 0
    j = 1
    for h in range(n_heads):
        target = h * head_dim
        while j <= target:
            running = running * z[j]
            j += 1
        logits = logits + w_ref[h] * running[None, :, :]   # (C,1,1)*(1,TBR,128)

    out_ref[...] = logits                                  # dense, unmasked store


def quantum_difficulty_adjuster(x, theta, fc_weight, fc_bias, *,
                                n_heads=2, head_dim=1, num_classes=3,
                                block_rows=512, transposed_output=False):
    """Pallas forward of QuantumDifficultyAdjuster.

    x         : (batch, n_heads*head_dim) float32
    theta     : (n_heads*head_dim*3,)     float32  circuit parameters
    fc_weight : (num_classes, n_heads)    float32  (PyTorch nn.Linear layout)
    fc_bias   : (num_classes,)            float32
    returns   : (batch, num_classes) logits (or (num_classes, batch) if
                 transposed_output=True, which skips the final XLA transpose).
    """
    n_qubits = n_heads * head_dim
    batch = x.shape[0]

    # --- batch tiling: fold batch onto (rows, 128); MiB-scale grid steps. -----
    rows = pl.cdiv(batch, _LANES)                       # 128 samples per row
    if rows <= 8:
        tbr = rows                                      # single full-extent tile
    else:
        half = pl.cdiv(rows, 2)                         # >=2 steps (v7x megacore)
        tbr = min(block_rows, ((half + 7) // 8) * 8)    # sublane rule: multiple of 8
        tbr = max(8, min(tbr, 4096) // 8 * 8)           # cap => VMEM-safe on all gens
    rows_padded = pl.cdiv(rows, tbr) * tbr
    padded = rows_padded * _LANES
    grid = (rows_padded // tbr,)

    # --- theta-only trig hoisted and folded into one cosine: -----------------
    #   z_q = A cos(x) + B sin(x) = R cos(x - phi),  A = cos(t1), B = -sin(t1)cos(t0)
    t0 = theta[0::3].astype(jnp.float32)
    t1 = theta[1::3].astype(jnp.float32)
    a_coef = jnp.cos(t1)
    b_coef = -jnp.sin(t1) * jnp.cos(t0)
    r_coef = jnp.sqrt(a_coef * a_coef + b_coef * b_coef).reshape(n_qubits, 1, 1)
    phi = jnp.arctan2(b_coef, a_coef).reshape(n_qubits, 1, 1)

    # fc params pre-shaped so the kernel never reshapes: w[h] -> (num_classes,1,1).
    w = fc_weight.astype(jnp.float32).T.reshape(n_heads, num_classes, 1, 1)
    bias = fc_bias.astype(jnp.float32).reshape(num_classes, 1, 1)

    # --- input layout: pad batch to the tile, batch onto sublanes+lanes. -----
    x_f = x.reshape(batch, n_qubits).astype(jnp.float32)
    if padded != batch:
        x_f = jnp.pad(x_f, ((0, padded - batch), (0, 0)))
    x_t = x_f.T.reshape(n_qubits, rows_padded, _LANES)

    kernel = functools.partial(_qda_kernel, n_heads=n_heads, head_dim=head_dim)

    # Double-buffered x + out blocks; raise the scoped VMEM limit only if needed.
    vmem_bytes = 2 * (n_qubits + num_classes) * tbr * _LANES * 4 + (1 << 20)
    cp_kwargs = dict(dimension_semantics=("parallel",))
    if vmem_bytes > 12 * 1024 * 1024:
        cp_kwargs["vmem_limit_bytes"] = 32 * 1024 * 1024

    out3 = pl.pallas_call(
        kernel,
        out_shape=jax.ShapeDtypeStruct((num_classes, rows_padded, _LANES), jnp.float32),
        grid=grid,
        in_specs=[
            pl.BlockSpec((n_qubits, tbr, _LANES), lambda i: (0, i, 0)),          # x
            pl.BlockSpec((n_qubits, 1, 1), lambda i: (0, 0, 0)),                 # R
            pl.BlockSpec((n_qubits, 1, 1), lambda i: (0, 0, 0)),                 # phi
            pl.BlockSpec((n_heads, num_classes, 1, 1), lambda i: (0, 0, 0, 0)),  # W
            pl.BlockSpec((num_classes, 1, 1), lambda i: (0, 0, 0)),              # bias
        ],
        out_specs=pl.BlockSpec((num_classes, tbr, _LANES), lambda i: (0, i, 0)),
        compiler_params=pltpu.CompilerParams(**cp_kwargs),
    )(x_t, r_coef, phi, w, bias)

    out_t = out3.reshape(num_classes, padded)[:, :batch]    # drop batch padding
    if transposed_output:
        return out_t                                        # (num_classes, batch)
    return out_t.T                                          # (batch, num_classes)


def _reference(x, theta, fc_weight, fc_bias, *, n_heads, head_dim, num_classes):
    """Pure-JAX closed-form reference (same math, standard layout)."""
    n_qubits = n_heads * head_dim
    x2 = x.reshape(-1, n_qubits).astype(jnp.float32)
    t0 = theta[0::3].reshape(1, n_qubits)
    t1 = theta[1::3].reshape(1, n_qubits)
    z = jnp.cos(t1) * jnp.cos(x2) - jnp.sin(t1) * jnp.cos(t0) * jnp.sin(x2)
    cum = jnp.cumprod(z, axis=1)
    q = cum[:, jnp.arange(n_heads) * head_dim]              # (batch, n_heads)
    return q @ fc_weight.T + fc_bias[None, :]


if __name__ == "__main__":
    n_heads, head_dim, num_classes = 2, 1, 3
    n_qubits = n_heads * head_dim
    n_params = n_qubits * 3
    batch = 2

    key = jax.random.PRNGKey(0)
    k_theta, k_w, k_b, k_x = jax.random.split(key, 4)

    # Deterministic parameter init mirroring the module's __init__ shapes.
    theta = 0.1 * jax.random.normal(k_theta, (n_params,), dtype=jnp.float32)
    bound = 1.0 / jnp.sqrt(jnp.float32(n_heads))
    fc_weight = jax.random.uniform(k_w, (num_classes, n_heads),
                                   minval=-bound, maxval=bound, dtype=jnp.float32)
    fc_bias = jax.random.uniform(k_b, (num_classes,),
                                 minval=-bound, maxval=bound, dtype=jnp.float32)

    # Input: (batch_size, 2) as the module docstring states.
    x = jax.random.normal(k_x, (batch, n_heads * head_dim), dtype=jnp.float32)

    logits = quantum_difficulty_adjuster(
        x, theta, fc_weight, fc_bias,
        n_heads=n_heads, head_dim=head_dim, num_classes=num_classes)
    jax.block_until_ready(logits)

    assert logits.shape == (batch, num_classes)
    assert logits.dtype == jnp.float32

    ref = _reference(x, theta, fc_weight, fc_bias,
                     n_heads=n_heads, head_dim=head_dim, num_classes=num_classes)
    assert jnp.allclose(logits, ref, atol=1e-5, rtol=1e-5)

    print("KERNEL_OK")
</pallas_src>

<mosaic_0001>
module attributes {stable_mosaic.version = 11 : i64} {
  func.func @_qda_kernel(%arg0: i32, %arg1: memref<2x1x128xf32, #tpu.memory_space<vmem>>, %arg2: memref<2x1x1xf32, #tpu.memory_space<vmem>>, %arg3: memref<2x1x1xf32, #tpu.memory_space<vmem>>, %arg4: memref<2x3x1x1xf32, #tpu.memory_space<vmem>>, %arg5: memref<3x1x1xf32, #tpu.memory_space<vmem>>, %arg6: memref<3x1x128xf32, #tpu.memory_space<vmem>>) attributes {dimension_semantics = [#tpu.dimension_semantics<parallel>], iteration_bounds = array<i64: 1>, scalar_prefetch = 0 : i64, scratch_operands = 0 : i64, tpu.core_type = #tpu.core_type<tc>, window_params = [{transform_indices = @transform_0, window_bounds = array<i64: 2, 1, 128>}, {pipeline_mode = #tpu.pipeline_mode<synchronous>, transform_indices = @transform_1, window_bounds = array<i64: 2, 1, 1>}, {pipeline_mode = #tpu.pipeline_mode<synchronous>, transform_indices = @transform_2, window_bounds = array<i64: 2, 1, 1>}, {pipeline_mode = #tpu.pipeline_mode<synchronous>, transform_indices = @transform_3, window_bounds = array<i64: 2, 3, 1, 1>}, {pipeline_mode = #tpu.pipeline_mode<synchronous>, transform_indices = @transform_4, window_bounds = array<i64: 3, 1, 1>}, {transform_indices = @transform_5, window_bounds = array<i64: 3, 1, 128>}]} {
    %c0 = arith.constant 0 : index
    %c0_0 = arith.constant 0 : index
    %c0_1 = arith.constant 0 : index
    %0 = vector.load %arg1[%c0, %c0_0, %c0_1] : memref<2x1x128xf32, #tpu.memory_space<vmem>>, vector<2x1x128xf32>
    %c0_2 = arith.constant 0 : index
    %c0_3 = arith.constant 0 : index
    %c0_4 = arith.constant 0 : index
    %1 = vector.load %arg2[%c0_2, %c0_3, %c0_4] : memref<2x1x1xf32, #tpu.memory_space<vmem>>, vector<2x1x1xf32>
    %c0_5 = arith.constant 0 : index
    %c0_6 = arith.constant 0 : index
    %c0_7 = arith.constant 0 : index
    %2 = vector.load %arg3[%c0_5, %c0_6, %c0_7] : memref<2x1x1xf32, #tpu.memory_space<vmem>>, vector<2x1x1xf32>
    %3 = vector.broadcast %2 : vector<2x1x1xf32> to vector<2x1x128xf32>
    %4 = arith.subf %0, %3 : vector<2x1x128xf32>
    %5 = math.cos %4 : vector<2x1x128xf32>
    %6 = vector.broadcast %1 : vector<2x1x1xf32> to vector<2x1x128xf32>
    %7 = arith.mulf %6, %5 : vector<2x1x128xf32>
    %c0_8 = arith.constant 0 : index
    %c0_9 = arith.constant 0 : index
    %c0_10 = arith.constant 0 : index
    %8 = vector.load %arg5[%c0_8, %c0_9, %c0_10] : memref<3x1x1xf32, #tpu.memory_space<vmem>>, vector<3x1x1xf32>
    %9 = vector.shape_cast %8 : vector<3x1x1xf32> to vector<3x1x1xf32>
    %10 = vector.broadcast %9 : vector<3x1x1xf32> to vector<3x1x128xf32>
    %11 = vector.extract_strided_slice %7 {offsets = [0, 0, 0], sizes = [1, 1, 128], strides = [1, 1, 1]} : vector<2x1x128xf32> to vector<1x1x128xf32>
    %12 = vector.shape_cast %11 : vector<1x1x128xf32> to vector<1x128xf32>
    %c0_11 = arith.constant 0 : index
    %c0_12 = arith.constant 0 : index
    %c0_13 = arith.constant 0 : index
    %c0_14 = arith.constant 0 : index
    %13 = vector.load %arg4[%c0_11, %c0_12, %c0_13, %c0_14] : memref<2x3x1x1xf32, #tpu.memory_space<vmem>>, vector<1x3x1x1xf32>
    %14 = vector.shape_cast %13 : vector<1x3x1x1xf32> to vector<3x1x1xf32>
    %15 = vector.shape_cast %12 : vector<1x128xf32> to vector<1x1x128xf32>
    %16 = vector.broadcast %14 : vector<3x1x1xf32> to vector<3x1x128xf32>
    %17 = vector.broadcast %15 : vector<1x1x128xf32> to vector<3x1x128xf32>
    %18 = arith.mulf %16, %17 : vector<3x1x128xf32>
    %19 = arith.addf %10, %18 : vector<3x1x128xf32>
    %20 = vector.extract_strided_slice %7 {offsets = [1, 0, 0], sizes = [1, 1, 128], strides = [1, 1, 1]} : vector<2x1x128xf32> to vector<1x1x128xf32>
    %21 = vector.shape_cast %20 : vector<1x1x128xf32> to vector<1x128xf32>
    %22 = arith.mulf %12, %21 : vector<1x128xf32>
    %c1 = arith.constant 1 : index
    %c0_15 = arith.constant 0 : index
    %c0_16 = arith.constant 0 : index
    %c0_17 = arith.constant 0 : index
    %23 = vector.load %arg4[%c1, %c0_15, %c0_16, %c0_17] : memref<2x3x1x1xf32, #tpu.memory_space<vmem>>, vector<1x3x1x1xf32>
    %24 = vector.shape_cast %23 : vector<1x3x1x1xf32> to vector<3x1x1xf32>
    %25 = vector.shape_cast %22 : vector<1x128xf32> to vector<1x1x128xf32>
    %26 = vector.broadcast %24 : vector<3x1x1xf32> to vector<3x1x128xf32>
    %27 = vector.broadcast %25 : vector<1x1x128xf32> to vector<3x1x128xf32>
    %28 = arith.mulf %26, %27 : vector<3x1x128xf32>
    %29 = arith.addf %19, %28 : vector<3x1x128xf32>
    %c0_18 = arith.constant 0 : index
    %c0_19 = arith.constant 0 : index
    %c0_20 = arith.constant 0 : index
    %30 = vector.load %arg6[%c0_18, %c0_19, %c0_20] : memref<3x1x128xf32, #tpu.memory_space<vmem>>, vector<3x1x128xf32>
    tpu.vector_store %arg6[%c0_18, %c0_19, %c0_20], %29 {strides = array<i32>} : memref<3x1x128xf32, #tpu.memory_space<vmem>>, vector<3x1x128xf32>,
    return
  }
  func.func @transform_0(%arg0: i32) -> (i32, i32, i32) {
    %c0_i32 = arith.constant 0 : i32
    %c0_i32_0 = arith.constant 0 : i32
    %c0_i32_1 = arith.constant 0 : i32
    return %c0_i32, %arg0, %c0_i32_0 : i32, i32, i32
  }
  func.func @transform_1(%arg0: i32) -> (i32, i32, i32) {
    %c0_i32 = arith.constant 0 : i32
    %c0_i32_0 = arith.constant 0 : i32
    %c0_i32_1 = arith.constant 0 : i32
    %c0_i32_2 = arith.constant 0 : i32
    return %c0_i32, %c0_i32_0, %c0_i32_1 : i32, i32, i32
  }
  func.func @transform_2(%arg0: i32) -> (i32, i32, i32) {
    %c0_i32 = arith.constant 0 : i32
    %c0_i32_0 = arith.constant 0 : i32
    %c0_i32_1 = arith.constant 0 : i32
    %c0_i32_2 = arith.constant 0 : i32
    return %c0_i32, %c0_i32_0, %c0_i32_1 : i32, i32, i32
  }
  func.func @transform_3(%arg0: i32) -> (i32, i32, i32, i32) {
    %c0_i32 = arith.constant 0 : i32
    %c0_i32_0 = arith.constant 0 : i32
    %c0_i32_1 = arith.constant 0 : i32
    %c0_i32_2 = arith.constant 0 : i32
    %c0_i32_3 = arith.constant 0 : i32
    return %c0_i32, %c0_i32_0, %c0_i32_1, %c0_i32_2 : i32, i32, i32, i32
  }
  func.func @transform_4(%arg0: i32) -> (i32, i32, i32) {
    %c0_i32 = arith.constant 0 : i32
    %c0_i32_0 = arith.constant 0 : i32
    %c0_i32_1 = arith.constant 0 : i32
    %c0_i32_2 = arith.constant 0 : i32
    return %c0_i32, %c0_i32_0, %c0_i32_1 : i32, i32, i32
  }
  func.func @transform_5(%arg0: i32) -> (i32, i32, i32) {
    %c0_i32 = arith.constant 0 : i32
    %c0_i32_0 = arith.constant 0 : i32
    %c0_i32_1 = arith.constant 0 : i32
    return %c0_i32, %arg0, %c0_i32_0 : i32, i32, i32
  }
}

</mosaic_0001>

<llo_original>
// kernel: tpu_custom_call.1
$region0: #{tpu_custom_call.1}
  #allocation0 [shape = 'u32[]', space=smem, size = 0x4, offset = 0x4, fixed_abs, tag = 'smem constant byte address 0x4 - core index']
  #allocation1 [shape = 'u32[144,128]{1,0:T(1,128)}', space=vmem, size = 0x12000, scoped, tag = 'internal scratch']
  %s0 = inlined_call_operand.vmem [shape: f32[2,1,128], index: 0, kind: input, shape index: {}]
  %s1 = inlined_call_operand.vmem [shape: f32[2,1,1], index: 1, kind: input, shape index: {}]
  %s2 = inlined_call_operand.vmem [shape: f32[2,1,1], index: 2, kind: input, shape index: {}]
  %s3 = inlined_call_operand.vmem [shape: f32[2,3,1,1], index: 3, kind: input, shape index: {}]
  %s4 = inlined_call_operand.vmem [shape: f32[3,1,1], index: 4, kind: input, shape index: {}]
  %s5 = inlined_call_operand.hbm [shape: f32[3,1,128], index: 5, kind: output, shape index: {}]
  %s6 = sld [smem:[#allocation0]]
  $region30: #{tpu_custom_call.1} parent=0
    _
  %s8 = ssub.s32 1, %s6
  %s9 = scalar_select 0, %s8, %s6
  $region1: #{tpu_custom_call.1} parent=0
    #allocation2 [shape = 'u8[1536]{0}', space=vmem, size = 0x800, scoped, tag = 'output window, operand 0, single buffered']
    #allocation3 [shape = 's32[1]{0}', space=sflag, size = 0x4, scoped, tag = 'scoped memory for tpu_custom_call.1']
    %10 = vsyncpa [#allocation3], 0
    // Predicated region
    $region2: #{tpu_custom_call.1} parent=1 // pred_check
      _
    $region3: #{tpu_custom_call.1} parent=1 // pred_check_branch
      %12 = sbr.rel (0) target = $region5
    $region4: #{tpu_custom_call.1} parent=1 // pred_region
      _
    $region5: #{tpu_custom_call.1} parent=1 // pred_fallthru
      _
    // Predicated region
    $region6: #{tpu_custom_call.1} parent=1 // pred_check
      _
    $region7: #{tpu_custom_call.1} parent=1 // pred_check_branch
      %14 = sbr.rel (0) target = $region9
    $region8: #{tpu_custom_call.1} parent=1 // pred_region
      _
    $region9: #{tpu_custom_call.1} parent=1 // pred_fallthru
      _
    // Predicated region
    $region10: #{tpu_custom_call.1} parent=1 // pred_check
      _
    $region11: #{tpu_custom_call.1} parent=1 // pred_check_branch
      %16 = sbr.rel (0) target = $region13
    $region12: #{tpu_custom_call.1} parent=1 // pred_region
      _
    $region13: #{tpu_custom_call.1} parent=1 // pred_fallthru
      _
    // Predicated region
    $region14: #{tpu_custom_call.1} parent=1 // pred_check
      _
    $region15: #{tpu_custom_call.1} parent=1 // pred_check_branch
      %18 = sbr.rel (0) target = $region17
    $region16: #{tpu_custom_call.1} parent=1 // pred_region
      _
    $region17: #{tpu_custom_call.1} parent=1 // pred_fallthru
      _
    // Predicated region
    $region18: #{tpu_custom_call.1} parent=1 // pred_check
      _
    $region19: #{tpu_custom_call.1} parent=1 // pred_check_branch
      %20 = sbr.rel (0) target = $region21
    $region20: #{tpu_custom_call.1} parent=1 // pred_region
      _
    $region21: #{tpu_custom_call.1} parent=1 // pred_fallthru
      _
    %v21 = vld [vmem:[%s0] sm:$0x1]
    %v22 = vld [vmem:[%s0 + $0x1] sm:$0x1]
    %v23 = vld [vmem:[%s1] sm:$0x1]
    %v24 = vld [vmem:[%s1 + $0x1] sm:$0x1]
    %v25 = vld [vmem:[%s2] sm:$0x1]
    %v26 = vld [vmem:[%s2 + $0x1] sm:$0x1]
    %28 = vset.pattern.permute.xlu0 0
    %29 = vperm.xlu0 %28, %v25
    %v30 = vpop.permute.xlu0 %29
    %v32 = vlaneseq
    %v33 = vshrl.u32 %v32, 7
    %v34 = vsub.s32 0, %v33
    %v35 = vrot.slane %v30, %v34
    %37 = vset.pattern.permute.xlu0 0
    %38 = vperm.xlu0 %37, %v26
    %v39 = vpop.permute.xlu0 %38
    %v41 = vlaneseq
    %v42 = vshrl.u32 %v41, 7
    %v43 = vsub.s32 0, %v42
    %v44 = vrot.slane %v39, %v43
    %v45 = vsub.f32 %v21, %v35
    %v46 = vsub.f32 %v22, %v44
    %v47 = vand.u32 2147483647, %v45
    %vm48 = vcmp.le.f32.partialorder %v47, 0.7853982
    %vm49 = vcmp.lt.s32.totalorder %v45, 0
    %v50 = vand.u32 %v45, 2139095040
    %v51 = vshrl.u32 %v50, 23
    %v52 = vsub.s32 %v51, 127
    %v53 = vand.u32 2147483647, %v45
    %v54 = vand.u32 %v53, 8388607
    %v55 = vor.u32 %v54, 8388608
    %v56 = vsub.s32 0, %v55
    %v57 = vadd.s32 %v52, 1
    %vm58 = vcmp.gt.s32.totalorder %v57, 0
    %v59 = vsel %vm58, %v57, 0
    %v60 = vshrl.u32 %v59, 5
    %v61 = vand.u32 %v59, 31
    %v62 = vsub.s32 32, %v61
    %v63 = vshrl.u32 683565275, %v62
    %v64 = vshll.u32 683565275, %v61
    %v65 = vshrl.u32 2475754826, %v62
    %v66 = vor.u32 %v64, %v65
    %v67 = vshll.u32 2475754826, %v61
    %v68 = vshrl.u32 2131351028, %v62
    %v69 = vor.u32 %v67, %v68
    %v70 = vshll.u32 2131351028, %v61
    %v71 = vshrl.u32 2102212464, %v62
    %v72 = vor.u32 %v70, %v71
    %v73 = vshll.u32 2102212464, %v61
    %v74 = vshrl.u32 920167782, %v62
    %v75 = vor.u32 %v73, %v74
    %v76 = vshll.u32 920167782, %v61
    %v77 = vshrl.u32 1326507024, %v62
    %v78 = vor.u32 %v76, %v77
    %vm79 = vcmp.lt.s32.totalorder %v60, 1
    %vm80 = vcmp.lt.s32.totalorder %v60, 2
    %vm81 = vcmp.lt.s32.totalorder %v60, 3
    %vm82 = vcmp.lt.s32.totalorder %v60, 4
    %v83 = vsel %vm79, %v63, %v66
    %v84 = vsel %vm82, %v72, 2102212464
    %v85 = vsel %vm81, %v69, %v84
    %v86 = vsel %vm80, %v83, %v85
    %v87 = vsel %vm79, %v66, %v69
    %v88 = vsel %vm82, %v75, 920167782
    %v89 = vsel %vm81, %v72, %v88
    %v90 = vsel %vm80, %v87, %v89
    %v91 = vsel %vm79, %v69, %v72
    %v92 = vsel %vm82, %v78, 1326507024
    %v93 = vsel %vm81, %v75, %v92
    %v94 = vsel %vm80, %v91, %v93
    %v95 = vshll.u32 %v55, 8
    %v96 = vmul.u32.u64.compose %v95, %v94
    %v97 = vextract.low.u32 %v96
    %v98 = vextract.high.u32 %v96
    %v99 = vmul.u32.u64.compose %v95, %v90
    %v100 = vextract.low.u32 %v99
    %v101 = vextract.high.u32 %v99
    %v102 = vmul.u32 %v95, %v86
    %v103 = vadd.s32 %v98, %v100
    %vm104 = vc.u32 %v98, %v100
    %v105 = vadd.s32 %v101, 1
    %v106 = vsel %vm104, %v105, %v101
    %v107 = vadd.s32 %v102, %v106
    %v108 = vadd.s32 %v107, 536870912
    %v109 = vshrl.u32 %v108, 30
    %v110 = vshll.u32 %v109, 30
    %v111 = vsub.s32 %v107, %v110
    %vm112 = vcmp.lt.s32.totalorder %v111, 0
    %v113 = vsub.s32 0, %v111
    %v114 = vsel %vm112, %v113, %v111
    %v115 = vclz %v114
    %v116 = vsub.s32 %v115, 2
    %vm117 = vcmp.gt.s32.totalorder 0, %v116
    %v118 = vsel %vm117, 0, %v116
    %v119 = vsub.s32 32, %v118
    %v120 = vshll.u32 %v111, %v118
    %v121 = vshrl.u32 %v103, %v119
    %v122 = vor.u32 %v120, %v121
    %v123 = vsub.s32 4294967266, %v118
    %v124 = vadd.s32 %v123, 127
    %v125 = vshll.u32 %v124, 23
    %v126 = vor.u32 4788187, %v125
    %v127 = vand.u32 2147483647, %v126
    %v129 = vcvt.s32.f32 %v122
    %v130 = vmul.f32 %v129, %v127
    %v131 = vxor.u32 %v130, 2147483648
    %v132 = vsel %vm49, %v131, %v130
    %v133 = vsub.s32 4, %v109
    %v134 = vsel %vm49, %v133, %v109
    %v135 = vsel %vm48, %v45, %v132
    %v136 = vsel %vm48, 0, %v134
    %v137 = vcosq.f32.pop %v135
    %v138 = vsinq.f32.pop %v135
    %vm139 = vweird.f32 %v45
    %v140 = vand.u32 %v136, 3
    %vm141 = vcmp.lt.s32.totalorder %v140, 2
    %vm142 = vcmp.eq.s32.totalorder %v140, 0
    %v143 = vxor.u32 %v138, 2147483648
    %v144 = vsel %vm142, %v137, %v143
    %vm145 = vcmp.eq.s32.totalorder %v140, 2
    %v146 = vxor.u32 %v137, 2147483648
    %v147 = vsel %vm145, %v146, %v138
    %v148 = vsel %vm141, %v144, %v147
    %v149 = vsel %vm139, nan, %v148
    %v150 = vand.u32 2147483647, %v46
    %vm151 = vcmp.le.f32.partialorder %v150, 0.7853982
    %vm152 = vcmp.lt.s32.totalorder %v46, 0
    %v153 = vand.u32 %v46, 2139095040
    %v154 = vshrl.u32 %v153, 23
    %v155 = vsub.s32 %v154, 127
    %v156 = vand.u32 2147483647, %v46
    %v157 = vand.u32 %v156, 8388607
    %v158 = vor.u32 %v157, 8388608
    %v159 = vsub.s32 0, %v158
    %v160 = vadd.s32 %v155, 1
    %vm161 = vcmp.gt.s32.totalorder %v160, 0
    %v162 = vsel %vm161, %v160, 0
    %v163 = vshrl.u32 %v162, 5
    %v164 = vand.u32 %v162, 31
    %v165 = vsub.s32 32, %v164
    %v166 = vshrl.u32 683565275, %v165
    %v167 = vshll.u32 683565275, %v164
    %v168 = vshrl.u32 2475754826, %v165
    %v169 = vor.u32 %v167, %v168
    %v170 = vshll.u32 2475754826, %v164
    %v171 = vshrl.u32 2131351028, %v165
    %v172 = vor.u32 %v170, %v171
    %v173 = vshll.u32 2131351028, %v164
    %v174 = vshrl.u32 2102212464, %v165
    %v175 = vor.u32 %v173, %v174
    %v176 = vshll.u32 2102212464, %v164
    %v177 = vshrl.u32 920167782, %v165
    %v178 = vor.u32 %v176, %v177
    %v179 = vshll.u32 920167782, %v164
    %v180 = vshrl.u32 1326507024, %v165
    %v181 = vor.u32 %v179, %v180
    %vm182 = vcmp.lt.s32.totalorder %v163, 1
    %vm183 = vcmp.lt.s32.totalorder %v163, 2
    %vm184 = vcmp.lt.s32.totalorder %v163, 3
    %vm185 = vcmp.lt.s32.totalorder %v163, 4
    %v186 = vsel %vm182, %v166, %v169
    %v187 = vsel %vm185, %v175, 2102212464
    %v188 = vsel %vm184, %v172, %v187
    %v189 = vsel %vm183, %v186, %v188
    %v190 = vsel %vm182, %v169, %v172
    %v191 = vsel %vm185, %v178, 920167782
    %v192 = vsel %vm184, %v175, %v191
    %v193 = vsel %vm183, %v190, %v192
    %v194 = vsel %vm182, %v172, %v175
    %v195 = vsel %vm185, %v181, 1326507024
    %v196 = vsel %vm184, %v178, %v195
    %v197 = vsel %vm183, %v194, %v196
    %v198 = vshll.u32 %v158, 8
    %v199 = vmul.u32.u64.compose %v198, %v197
    %v200 = vextract.low.u32 %v199
    %v201 = vextract.high.u32 %v199
    %v202 = vmul.u32.u64.compose %v198, %v193
    %v203 = vextract.low.u32 %v202
    %v204 = vextract.high.u32 %v202
    %v205 = vmul.u32 %v198, %v189
    %v206 = vadd.s32 %v201, %v203
    %vm207 = vc.u32 %v201, %v203
    %v208 = vadd.s32 %v204, 1
    %v209 = vsel %vm207, %v208, %v204
    %v210 = vadd.s32 %v205, %v209
    %v211 = vadd.s32 %v210, 536870912
    %v212 = vshrl.u32 %v211, 30
    %v213 = vshll.u32 %v212, 30
    %v214 = vsub.s32 %v210, %v213
    %vm215 = vcmp.lt.s32.totalorder %v214, 0
    %v216 = vsub.s32 0, %v214
    %v217 = vsel %vm215, %v216, %v214
    %v218 = vclz %v217
    %v219 = vsub.s32 %v218, 2
    %vm220 = vcmp.gt.s32.totalorder 0, %v219
    %v221 = vsel %vm220, 0, %v219
    %v222 = vsub.s32 32, %v221
    %v223 = vshll.u32 %v214, %v221
    %v224 = vshrl.u32 %v206, %v222
    %v225 = vor.u32 %v223, %v224
    %v226 = vsub.s32 4294967266, %v221
    %v227 = vadd.s32 %v226, 127
    %v228 = vshll.u32 %v227, 23
    %v229 = vor.u32 4788187, %v228
    %v230 = vand.u32 2147483647, %v229
    %v232 = vcvt.s32.f32 %v225
    %v233 = vmul.f32 %v232, %v230
    %v234 = vxor.u32 %v233, 2147483648
    %v235 = vsel %vm152, %v234, %v233
    %v236 = vsub.s32 4, %v212
    %v237 = vsel %vm152, %v236, %v212
    %v238 = vsel %vm151, %v46, %v235
    %v239 = vsel %vm151, 0, %v237
    %v240 = vcosq.f32.pop %v238
    %v241 = vsinq.f32.pop %v238
    %vm242 = vweird.f32 %v46
    %v243 = vand.u32 %v239, 3
    %vm244 = vcmp.lt.s32.totalorder %v243, 2
    %vm245 = vcmp.eq.s32.totalorder %v243, 0
    %v246 = vxor.u32 %v241, 2147483648
    %v247 = vsel %vm245, %v240, %v246
    %vm248 = vcmp.eq.s32.totalorder %v243, 2
    %v249 = vxor.u32 %v240, 2147483648
    %v250 = vsel %vm248, %v249, %v241
    %v251 = vsel %vm244, %v247, %v250
    %v252 = vsel %vm242, nan, %v251
    %254 = vset.pattern.permute.xlu0 0
    %255 = vperm.xlu0 %254, %v23
    %v256 = vpop.permute.xlu0 %255
    %v258 = vlaneseq
    %v259 = vshrl.u32 %v258, 7
    %v260 = vsub.s32 0, %v259
    %v261 = vrot.slane %v256, %v260
    %263 = vset.pattern.permute.xlu0 0
    %264 = vperm.xlu0 %263, %v24
    %v265 = vpop.permute.xlu0 %264
    %v267 = vlaneseq
    %v268 = vshrl.u32 %v267, 7
    %v269 = vsub.s32 0, %v268
    %v270 = vrot.slane %v265, %v269
    %v271 = vmul.f32 %v261, %v149
    %v272 = vmul.f32 %v270, %v252
    %v273 = vld [vmem:[%s4] sm:$0x1]
    %v274 = vld [vmem:[%s4 + $0x1] sm:$0x1]
    %v275 = vld [vmem:[%s4 + $0x2] sm:$0x1]
    %277 = vset.pattern.permute.xlu0 0
    %278 = vperm.xlu0 %277, %v273
    %v279 = vpop.permute.xlu0 %278
    %v281 = vlaneseq
    %v282 = vshrl.u32 %v281, 7
    %v283 = vsub.s32 0, %v282
    %v284 = vrot.slane %v279, %v283
    %286 = vset.pattern.permute.xlu0 0
    %287 = vperm.xlu0 %286, %v274
    %v288 = vpop.permute.xlu0 %287
    %v290 = vlaneseq
    %v291 = vshrl.u32 %v290, 7
    %v292 = vsub.s32 0, %v291
    %v293 = vrot.slane %v288, %v292
    %295 = vset.pattern.permute.xlu0 0
    %296 = vperm.xlu0 %295, %v275
    %v297 = vpop.permute.xlu0 %296
    %v299 = vlaneseq
    %v300 = vshrl.u32 %v299, 7
    %v301 = vsub.s32 0, %v300
    %v302 = vrot.slane %v297, %v301
    %v303 = vld [vmem:[%s3] sm:$0x1]
    %v304 = vld [vmem:[%s3 + $0x1] sm:$0x1]
    %v305 = vld [vmem:[%s3 + $0x2] sm:$0x1]
    %307 = vset.pattern.permute.xlu0 0
    %308 = vperm.xlu0 %307, %v303
    %v309 = vpop.permute.xlu0 %308
    %v311 = vlaneseq
    %v312 = vshrl.u32 %v311, 7
    %v313 = vsub.s32 0, %v312
    %v314 = vrot.slane %v309, %v313
    %316 = vset.pattern.permute.xlu0 0
    %317 = vperm.xlu0 %316, %v304
    %v318 = vpop.permute.xlu0 %317
    %v320 = vlaneseq
    %v321 = vshrl.u32 %v320, 7
    %v322 = vsub.s32 0, %v321
    %v323 = vrot.slane %v318, %v322
    %325 = vset.pattern.permute.xlu0 0
    %326 = vperm.xlu0 %325, %v305
    %v327 = vpop.permute.xlu0 %326
    %v329 = vlaneseq
    %v330 = vshrl.u32 %v329, 7
    %v331 = vsub.s32 0, %v330
    %v332 = vrot.slane %v327, %v331
    %v333 = vmul.f32 %v314, %v271
    %v334 = vmul.f32 %v323, %v271
    %v335 = vmul.f32 %v332, %v271
    %v336 = vadd.f32 %v284, %v333
    %v337 = vadd.f32 %v293, %v334
    %v338 = vadd.f32 %v302, %v335
    %v339 = vmul.f32 %v271, %v272
    %s340 = scalar_lea.vmem %s3, 3
    %v341 = vld [vmem:[%s340] sm:$0x1]
    %v342 = vld [vmem:[%s340 + $0x1] sm:$0x1]
    %v343 = vld [vmem:[%s340 + $0x2] sm:$0x1]
    %345 = vset.pattern.permute.xlu0 0
    %346 = vperm.xlu0 %345, %v341
    %v347 = vpop.permute.xlu0 %346
    %v349 = vlaneseq
    %v350 = vshrl.u32 %v349, 7
    %v351 = vsub.s32 0, %v350
    %v352 = vrot.slane %v347, %v351
    %354 = vset.pattern.permute.xlu0 0
    %355 = vperm.xlu0 %354, %v342
    %v356 = vpop.permute.xlu0 %355
    %v358 = vlaneseq
    %v359 = vshrl.u32 %v358, 7
    %v360 = vsub.s32 0, %v359
    %v361 = vrot.slane %v356, %v360
    %363 = vset.pattern.permute.xlu0 0
    %364 = vperm.xlu0 %363, %v343
    %v365 = vpop.permute.xlu0 %364
    %v367 = vlaneseq
    %v368 = vshrl.u32 %v367, 7
    %v369 = vsub.s32 0, %v368
    %v370 = vrot.slane %v365, %v369
    %v371 = vmul.f32 %v352, %v339
    %v372 = vmul.f32 %v361, %v339
    %v373 = vmul.f32 %v370, %v339
    %v374 = vadd.f32 %v336, %v371
    %v375 = vadd.f32 %v337, %v372
    %v376 = vadd.f32 %v338, %v373
    %377 = vst [vmem:[#allocation2] sm:$0x1] %v374
    %378 = vst [vmem:[#allocation2 + $0x1] sm:$0x1] %v375
    %379 = vst [vmem:[#allocation2 + $0x2] sm:$0x1] %v376
    // Predicated region
    $region22: #{tpu_custom_call.1} parent=1 // pred_check
      _
    $region23: #{tpu_custom_call.1} parent=1 // pred_check_branch
      %381 = sbr.rel (0) target = $region25
    $region24: #{tpu_custom_call.1} parent=1 // pred_region
      %s383 = ssub.s32 48, 48
      %384 = vsyncadd [#allocation3], %s383
      %s385 = sshll.u32 [#allocation2], 4
      %s386 = int_to_ptr.vmem [resolvable:$true] %s385
      %391 = dma.vmem_to_hbm [thread:$0]  %s386, 48, %s5, [#allocation3], 16, 16, 1
    $region25: #{tpu_custom_call.1} parent=1 // pred_fallthru
      _
    // Predicated region
    $region26: #{tpu_custom_call.1} parent=1 // pred_check
      _
    $region27: #{tpu_custom_call.1} parent=1 // pred_check_branch
      %393 = sbr.rel (0) target = $region29
    $region28: #{tpu_custom_call.1} parent=1 // pred_region
      %394 = dma.done [#allocation3], 48
    $region29: #{tpu_custom_call.1} parent=1 // pred_fallthru
      _
    %395 = vsyncpa [#allocation3], 1

</llo_original>
